<compile_context>
chip_gen: v6e
topology: v6e:2x2x1
jax: 0.10.0
libtpu: 0.0.40
codegen_flags: <defaults>
</compile_context>

<pallas_src>
import jax
import jax.numpy as jnp
from jax.experimental import pallas as pl
from jax.experimental.pallas import tpu as pltpu

_LANE = 128
_TARGET_BLOCK_BYTES = 4 << 20     # ~4 MiB blocks amortize the ~0.35 us/step cost
_SINGLE_BLOCK_BYTES = 2 << 20     # slabs <= 2 MiB: one full-array block
_VMEM_LIMIT_BYTES = 32 << 20      # covers 4 x 4 MiB double-buffered copies,
                                  # safe on v5e/v6e (128 MiB) and v7x (64 MiB)


def _base_encoder_kernel(x_ref, o_ref):
    # Identity encoder body: elementwise copy of the current tile.  A concrete
    # subclass would replace this with its conv / matmul pipeline.
    o_ref[...] = x_ref[...]


def _identity_copy_2d(x2d: jnp.ndarray) -> jnp.ndarray:
    """Streaming identity copy of a lane-dense (rows, lane_w) slab."""
    rows, lane_w = x2d.shape
    itemsize = jnp.dtype(x2d.dtype).itemsize
    # Dtype-aware sublane multiple for the second-minor block dim.
    sublane = {4: 8, 2: 16, 1: 32}.get(itemsize, 8)

    slab_bytes = rows * lane_w * itemsize
    if slab_bytes <= _SINGLE_BLOCK_BYTES:
        # One block covering the full slab: block dims equal the array dims,
        # so the (8, 128) divisibility rule does not apply.
        row_tile = rows
    else:
        target_rows = max(sublane, _TARGET_BLOCK_BYTES // (lane_w * itemsize))
        target_rows = (target_rows // sublane) * sublane
        # Keep the grid >= 2 steps whenever the slab exceeds a single block so
        # both v7x TensorCores get work.
        half_rows = pl.cdiv(pl.cdiv(rows, 2), sublane) * sublane
        row_tile = max(sublane, min(target_rows, half_rows))

    grid = (pl.cdiv(rows, row_tile),)   # ragged last block is masked by Pallas

    return pl.pallas_call(
        _base_encoder_kernel,
        out_shape=jax.ShapeDtypeStruct((rows, lane_w), x2d.dtype),
        grid_spec=pl.GridSpec(
            grid=grid,
            in_specs=[pl.BlockSpec((row_tile, lane_w), lambda i: (i, 0))],
            out_specs=pl.BlockSpec((row_tile, lane_w), lambda i: (i, 0)),
        ),
        compiler_params=pltpu.CompilerParams(
            dimension_semantics=("parallel",),
            vmem_limit_bytes=_VMEM_LIMIT_BYTES,
        ),
    )(x2d)


def base_encoder_forward(x: jnp.ndarray) -> jnp.ndarray:
    """Pallas implementation of BaseEncoder.forward (identity contract).

    Args:
      x: arbitrary-shaped tensor, e.g. NCHW (N, C, H, W).
    Returns:
      Tensor with identical shape/dtype/values.
    """
    orig_shape = x.shape
    total = x.size
    if total == 0:
        return x

    flat = x.reshape(-1)

    # Lane-dense layout: put the largest multiple of 128 that divides the
    # element count on the lane axis (unmasked vst, full DMA efficiency).
    lane_w = None
    for mult in (8, 4, 2, 1):          # try 1024, 512, 256, 128 lanes
        cand = mult * _LANE
        if total % cand == 0:
            lane_w = cand
            break

    if lane_w is not None:
        out_flat = _identity_copy_2d(
            flat.reshape(total // lane_w, lane_w)).reshape(-1)
    else:
        # Remainder path: run the kernel on the lane-dense head and carry the
        # (< 128-element) tail around it untouched -- no full-tensor pad/slice.
        main = (total // _LANE) * _LANE
        if main == 0:
            out_flat = flat            # tiny tensor: identity, nothing to stage
        else:
            head = _identity_copy_2d(flat[:main].reshape(main // _LANE, _LANE))
            out_flat = jnp.concatenate([head.reshape(-1), flat[main:]])

    return out_flat.reshape(orig_shape)


if __name__ == "__main__":
    key = jax.random.PRNGKey(0)
    # Small NCHW input consistent with an image-encoder interface.
    x = jax.random.normal(key, (2, 4, 16, 16), dtype=jnp.float32)

    y = jax.block_until_ready(base_encoder_forward(x))

    # Sanity check: identity contract (shape, dtype, values).
    assert y.shape == x.shape
    assert y.dtype == x.dtype
    assert bool(jnp.allclose(y, x))

    print("KERNEL_OK")
</pallas_src>

<mosaic_0001>
module attributes {stable_mosaic.version = 11 : i64} {
  func.func @_base_encoder_kernel(%arg0: i32, %arg1: memref<2x1024xf32, #tpu.memory_space<vmem>>, %arg2: memref<2x1024xf32, #tpu.memory_space<vmem>>) attributes {dimension_semantics = [#tpu.dimension_semantics<parallel>], iteration_bounds = array<i64: 1>, scalar_prefetch = 0 : i64, scratch_operands = 0 : i64, tpu.core_type = #tpu.core_type<tc>, window_params = [{transform_indices = @transform_0, window_bounds = array<i64: 2, 1024>}, {transform_indices = @transform_1, window_bounds = array<i64: 2, 1024>}]} {
    %c0 = arith.constant 0 : index
    %c0_0 = arith.constant 0 : index
    %0 = vector.load %arg1[%c0, %c0_0] : memref<2x1024xf32, #tpu.memory_space<vmem>>, vector<2x1024xf32>
    %c0_1 = arith.constant 0 : index
    %c0_2 = arith.constant 0 : index
    %1 = vector.load %arg2[%c0_1, %c0_2] : memref<2x1024xf32, #tpu.memory_space<vmem>>, vector<2x1024xf32>
    tpu.vector_store %arg2[%c0_1, %c0_2], %0 {strides = array<i32>} : memref<2x1024xf32, #tpu.memory_space<vmem>>, vector<2x1024xf32>,
    return
  }
  func.func @transform_0(%arg0: i32) -> (i32, i32) {
    %c0_i32 = arith.constant 0 : i32
    %c0_i32_0 = arith.constant 0 : i32
    return %arg0, %c0_i32 : i32, i32
  }
  func.func @transform_1(%arg0: i32) -> (i32, i32) {
    %c0_i32 = arith.constant 0 : i32
    %c0_i32_0 = arith.constant 0 : i32
    return %arg0, %c0_i32 : i32, i32
  }
}

</mosaic_0001>

<llo_original>
// kernel: tpu_custom_call.1
$region0: #{tpu_custom_call.1}
  #allocation0 [shape = 'u32[]', space=smem, size = 0x4, offset = 0x4, fixed_abs, tag = 'smem constant byte address 0x4 - core index']
  #allocation1 [shape = 'u32[144,128]{1,0:T(1,128)}', space=vmem, size = 0x12000, scoped, tag = 'internal scratch']
  %s0 = inlined_call_operand.hbm [shape: f32[2,1024], index: 0, kind: input, shape index: {}]
  %s1 = inlined_call_operand.hbm [shape: f32[2,1024], index: 1, kind: output, shape index: {}]
  %s2 = sld [smem:[#allocation0]]
  $region18: #{tpu_custom_call.1} parent=0
    _
  %s4 = ssub.s32 1, %s2
  %s5 = scalar_select 0, %s4, %s2
  $region1: #{tpu_custom_call.1} parent=0
    #allocation2 [shape = 'u8[8192]{0}', space=vmem, size = 0x2000, scoped, tag = 'input window, operand 0, single buffered']
    #allocation3 [shape = 's32[1]{0}', space=sflag, size = 0x4, scoped, tag = 'scoped memory for tpu_custom_call.1']
    #allocation4 [shape = 's32[1]{0}', space=sflag, size = 0x4, scoped, tag = 'scoped memory for tpu_custom_call.1']
    #allocation5 [shape = 'u8[8192]{0}', space=vmem, size = 0x2000, scoped, tag = 'output window, operand 0, single buffered']
    %6 = vsyncpa [#allocation3], 0
    %7 = vsyncpa [#allocation4], 0
    // Predicated region
    $region2: #{tpu_custom_call.1} parent=1 // pred_check
      _
    $region3: #{tpu_custom_call.1} parent=1 // pred_check_branch
      %9 = sbr.rel (0) target = $region5
    $region4: #{tpu_custom_call.1} parent=1 // pred_region
      %s11 = ssub.s32 256, 256
      %12 = vsyncadd [#allocation3], %s11
      %s14 = sshll.u32 [#allocation2], 4
      %s15 = int_to_ptr.vmem [resolvable:$true] %s14
      %17 = dma.hbm_to_vmem [thread:$0]  %s0, 256, %s15, [#allocation3]
    $region5: #{tpu_custom_call.1} parent=1 // pred_fallthru
      _
    // Predicated region
    $region6: #{tpu_custom_call.1} parent=1 // pred_check
      _
    $region7: #{tpu_custom_call.1} parent=1 // pred_check_branch
      %19 = sbr.rel (0) target = $region9
    $region8: #{tpu_custom_call.1} parent=1 // pred_region
      %20 = dma.done [#allocation3], 256
    $region9: #{tpu_custom_call.1} parent=1 // pred_fallthru
      _
    %v21 = vld [vmem:[#allocation2] sm:$0xff]
    %v22 = vld [vmem:[#allocation2 + $0x8] sm:$0xff]
    %23 = vst [vmem:[#allocation5] sm:$0xff] %v21
    %24 = vst [vmem:[#allocation5 + $0x8] sm:$0xff] %v22
    // Predicated region
    $region10: #{tpu_custom_call.1} parent=1 // pred_check
      _
    $region11: #{tpu_custom_call.1} parent=1 // pred_check_branch
      %26 = sbr.rel (0) target = $region13
    $region12: #{tpu_custom_call.1} parent=1 // pred_region
      %s28 = ssub.s32 256, 256
      %29 = vsyncadd [#allocation4], %s28
      %s31 = sshll.u32 [#allocation5], 4
      %s32 = int_to_ptr.vmem [resolvable:$true] %s31
      %34 = dma.vmem_to_hbm [thread:$0]  %s32, 256, %s1, [#allocation4]
    $region13: #{tpu_custom_call.1} parent=1 // pred_fallthru
      _
    // Predicated region
    $region14: #{tpu_custom_call.1} parent=1 // pred_check
      _
    $region15: #{tpu_custom_call.1} parent=1 // pred_check_branch
      %36 = sbr.rel (0) target = $region17
    $region16: #{tpu_custom_call.1} parent=1 // pred_region
      %37 = dma.done [#allocation4], 256
    $region17: #{tpu_custom_call.1} parent=1 // pred_fallthru
      _
    %38 = vsyncpa [#allocation3], 1
    %39 = vsyncpa [#allocation4], 1

</llo_original>
